<compile_context>
chip_gen: v6e
topology: v6e:2x2x1
jax: 0.10.0
libtpu: 0.0.40
codegen_flags: <defaults>
</compile_context>

<pallas_src>
import jax
import jax.numpy as jnp
from jax import lax
from jax.experimental import pallas as pl
from jax.experimental.pallas import tpu as pltpu


def _round_up(x, m):
    return (x + m - 1) // m * m


def _vmem_limit_bytes():
    """Generation-aware VMEM limit: ~75% of physical (48 MiB v7x, 96 MiB v5e/v6e)."""
    try:
        cap = int(pltpu.get_tpu_info().vmem_capacity_bytes)
    except Exception:
        cap = 64 * 1024 * 1024  # conservative fallback == v7x per-TC capacity
    return int(min((cap * 3) // 4, 100 * 1024 * 1024))


def _pick_sublane_tile(n_batch, r, c_in, c_out, itemsize, buf_budget_bytes,
                       target_steps=8):
    """Pick sublane tile T (block = (1, C, T, 128)) and padded row count R_pad.

    Constraints:
      * double-buffered input (C_in) + output (C_out) blocks fit buf_budget_bytes,
      * N * n_tiles >= target_steps grid steps so input DMA / compute / output DMA
        actually overlap (per-step overhead ~0.35 us, essentially free),
      * T multiple of 8 (Mosaic (8,128) tiling) unless it is the full extent,
      * T divides the (<= 7-row) padded row count -> no ragged / masked last tile.
    """
    if r <= 8:
        return r, r  # full-extent block: always legal, data is tiny anyway
    r8 = _round_up(r, 8)
    bytes_per_sublane = 2 * (c_in + c_out) * 128 * itemsize  # 2x = double buffering
    t_vmem = max(8, (buf_budget_bytes // bytes_per_sublane) // 8 * 8)
    tiles_wanted = -(-target_steps // n_batch)               # ceil
    t_steps = max(8, _round_up(-(-r // tiles_wanted), 8))    # ceil(r / tiles_wanted)
    t_cap = max(8, min(t_vmem, t_steps, r8))
    t = 8
    for cand in range(t_cap, 7, -8):  # largest 8-multiple <= cap that divides r8
        if r8 % cand == 0:
            t = cand
            break
    return t, _round_up(r, t)


def _make_vpu_kernel(c_in, c_out):
    """Small-C_out path: per-channel scalar(SMEM) x slab(VMEM) FMA on the VPU."""
    unroll = c_in <= 32

    def kernel(w_ref, x_ref, o_ref):
        # w_ref: (C_out, C_in) f32 in SMEM (scalar read -> sreg splat, no vreg bcast)
        # x_ref: (1, C_in, T, 128) VMEM
        # o_ref: (1, C_out, T, 128) VMEM  (sublane+lane dense -> unmasked vst)
        for co in range(c_out):  # static: c_out < 8 on this path
            acc = x_ref[0, 0].astype(jnp.float32) * w_ref[co, 0]
            if unroll:
                for ci in range(1, c_in):  # static unroll for tiny C_in
                    acc = acc + x_ref[0, ci].astype(jnp.float32) * w_ref[co, ci]
            else:
                def body(ci, a):
                    return a + x_ref[0, ci].astype(jnp.float32) * w_ref[co, ci]
                acc = lax.fori_loop(1, c_in, body, acc)
            o_ref[0, co] = acc.astype(o_ref.dtype)

    return kernel


def _mxu_kernel(w_ref, x_ref, o_ref):
    """Large C_in & C_out path: channel contraction on the MXU."""
    o_ref[0] = lax.dot_general(
        w_ref[...], x_ref[0],
        dimension_numbers=(((1,), (0,)), ((), ())),
        preferred_element_type=jnp.float32,
    ).astype(o_ref.dtype)


def conv1x1_forward(x_nchw, weight_oi):
    """Eval-mode forward of Dropout(0.5) -> Conv2d(C_in, C_out, 1, bias=False).

    x_nchw:    (N, C_in, H, W)
    weight_oi: (C_out, C_in)  (PyTorch (C_out, C_in, 1, 1) weight squeezed)
    returns:   (N, C_out, H, W)
    """
    N, C_in, H, W = x_nchw.shape
    C_out, c_in_w = weight_oi.shape
    assert c_in_w == C_in
    HW = H * W
    itemsize = jnp.dtype(x_nchw.dtype).itemsize

    vmem_limit = _vmem_limit_bytes()
    buf_budget = (vmem_limit * 3) // 4  # headroom for weight / compiler scratch

    # Fold spatial onto BOTH sublane and lane: (N, C, H, W) -> (N, C, R_pad, 128).
    r = pl.cdiv(HW, 128)
    t_sub, r_pad = _pick_sublane_tile(N, r, C_in, C_out, itemsize, buf_budget)
    hw_pad = r_pad * 128

    x_flat = x_nchw.reshape(N, C_in, HW)  # contiguous reshape only, no transpose
    if hw_pad != HW:
        x_flat = jnp.pad(x_flat, ((0, 0), (0, 0), (0, hw_pad - HW)))
    x_tiles = x_flat.reshape(N, C_in, r_pad, 128)

    n_tiles = r_pad // t_sub  # exact by construction (no ragged tile)
    grid = (N, n_tiles)

    use_mxu = (C_out >= 8) and (C_in >= 128)  # never take MXU for the M=1 LPIPS head
    if use_mxu:
        kernel = _mxu_kernel
        w_arg = weight_oi
        w_spec = pl.BlockSpec((C_out, C_in), lambda n, s: (0, 0))  # resident in VMEM
    else:
        kernel = _make_vpu_kernel(C_in, C_out)
        w_arg = weight_oi.astype(jnp.float32)  # 32-bit scalars for SMEM
        w_spec = pl.BlockSpec(memory_space=pltpu.MemorySpace.SMEM)

    out_tiles = pl.pallas_call(
        kernel,
        out_shape=jax.ShapeDtypeStruct((N, C_out, r_pad, 128), x_nchw.dtype),
        grid_spec=pltpu.PrefetchScalarGridSpec(
            num_scalar_prefetch=0,
            grid=grid,
            in_specs=[
                w_spec,
                # Activation tile; add pipeline_mode=pl.Buffered(3) here if xprof
                # ever shows exposed input DMA.
                pl.BlockSpec((1, C_in, t_sub, 128), lambda n, s: (n, 0, s, 0)),
            ],
            out_specs=pl.BlockSpec((1, C_out, t_sub, 128), lambda n, s: (n, 0, s, 0)),
        ),
        compiler_params=pltpu.CompilerParams(
            # Both axes independent -> megacore / v7x 2-TC sharding (N usually even).
            dimension_semantics=("parallel", "parallel"),
            vmem_limit_bytes=vmem_limit,
        ),
    )(w_arg, x_tiles)

    out_flat = out_tiles.reshape(N, C_out, hw_pad)
    if hw_pad != HW:
        out_flat = out_flat[:, :, :HW]  # drop lane padding
    return out_flat.reshape(N, C_out, H, W)


def reference_conv1x1(x_nchw, weight_oi):
    # Pure-JAX reference: y[n,co,h,w] = sum_ci w[co,ci] * x[n,ci,h,w]
    return jnp.einsum("nchw,oc->nohw", x_nchw, weight_oi)


if __name__ == "__main__":
    key = jax.random.PRNGKey(0)
    kx, kw = jax.random.split(key)

    N, C_in, H, W = 2, 4, 16, 16
    C_out = 1

    x = jax.random.normal(kx, (N, C_in, H, W), dtype=jnp.float32)
    # Deterministic init of the Conv2d(C_in, C_out, 1, bias=False) weight
    # (PyTorch shape (C_out, C_in, 1, 1) -> squeezed to (C_out, C_in)).
    bound = 1.0 / float(C_in) ** 0.5
    weight = jax.random.uniform(
        kw, (C_out, C_in), dtype=jnp.float32, minval=-bound, maxval=bound
    )

    conv = jax.jit(conv1x1_forward)
    y = jax.block_until_ready(conv(x, weight))

    y_ref = reference_conv1x1(x, weight)
    assert y.shape == (N, C_out, H, W)
    assert jnp.allclose(y, y_ref, atol=1e-5, rtol=1e-5)

    print("KERNEL_OK")
</pallas_src>

<mosaic_0001>
module attributes {stable_mosaic.version = 11 : i64} {
  func.func @kernel(%arg0: i32, %arg1: i32, %arg2: memref<1x4xf32, #tpu.memory_space<smem>>, %arg3: memref<1x4x2x128xf32, #tpu.memory_space<vmem>>, %arg4: memref<1x1x2x128xf32, #tpu.memory_space<vmem>>) attributes {dimension_semantics = [#tpu.dimension_semantics<parallel>, #tpu.dimension_semantics<parallel>], iteration_bounds = array<i64: 2, 1>, scalar_prefetch = 0 : i64, scratch_operands = 0 : i64, tpu.core_type = #tpu.core_type<tc>, window_params = [{transform_indices = @transform_0, window_bounds = array<i64: 1, 4>}, {transform_indices = @transform_1, window_bounds = array<i64: 1, 4, 2, 128>}, {transform_indices = @transform_2, window_bounds = array<i64: 1, 1, 2, 128>}]} {
    %c0 = arith.constant 0 : index
    %c0_0 = arith.constant 0 : index
    %c0_1 = arith.constant 0 : index
    %c0_2 = arith.constant 0 : index
    %0 = vector.load %arg3[%c0, %c0_0, %c0_1, %c0_2] : memref<1x4x2x128xf32, #tpu.memory_space<vmem>>, vector<1x1x2x128xf32>
    %1 = vector.shape_cast %0 : vector<1x1x2x128xf32> to vector<2x128xf32>
    %c0_3 = arith.constant 0 : index
    %c0_4 = arith.constant 0 : index
    %2 = memref.load %arg2[%c0_3, %c0_4] : memref<1x4xf32, #tpu.memory_space<smem>>
    %3 = vector.broadcast %2 : f32 to vector<2x128xf32>
    %4 = arith.mulf %1, %3 : vector<2x128xf32>
    %c0_5 = arith.constant 0 : index
    %c1 = arith.constant 1 : index
    %c0_6 = arith.constant 0 : index
    %c0_7 = arith.constant 0 : index
    %5 = vector.load %arg3[%c0_5, %c1, %c0_6, %c0_7] : memref<1x4x2x128xf32, #tpu.memory_space<vmem>>, vector<1x1x2x128xf32>
    %6 = vector.shape_cast %5 : vector<1x1x2x128xf32> to vector<2x128xf32>
    %c0_8 = arith.constant 0 : index
    %c1_9 = arith.constant 1 : index
    %7 = memref.load %arg2[%c0_8, %c1_9] : memref<1x4xf32, #tpu.memory_space<smem>>
    %8 = vector.broadcast %7 : f32 to vector<2x128xf32>
    %9 = arith.mulf %6, %8 : vector<2x128xf32>
    %10 = arith.addf %4, %9 : vector<2x128xf32>
    %c0_10 = arith.constant 0 : index
    %c2 = arith.constant 2 : index
    %c0_11 = arith.constant 0 : index
    %c0_12 = arith.constant 0 : index
    %11 = vector.load %arg3[%c0_10, %c2, %c0_11, %c0_12] : memref<1x4x2x128xf32, #tpu.memory_space<vmem>>, vector<1x1x2x128xf32>
    %12 = vector.shape_cast %11 : vector<1x1x2x128xf32> to vector<2x128xf32>
    %c0_13 = arith.constant 0 : index
    %c2_14 = arith.constant 2 : index
    %13 = memref.load %arg2[%c0_13, %c2_14] : memref<1x4xf32, #tpu.memory_space<smem>>
    %14 = vector.broadcast %13 : f32 to vector<2x128xf32>
    %15 = arith.mulf %12, %14 : vector<2x128xf32>
    %16 = arith.addf %10, %15 : vector<2x128xf32>
    %c0_15 = arith.constant 0 : index
    %c3 = arith.constant 3 : index
    %c0_16 = arith.constant 0 : index
    %c0_17 = arith.constant 0 : index
    %17 = vector.load %arg3[%c0_15, %c3, %c0_16, %c0_17] : memref<1x4x2x128xf32, #tpu.memory_space<vmem>>, vector<1x1x2x128xf32>
    %18 = vector.shape_cast %17 : vector<1x1x2x128xf32> to vector<2x128xf32>
    %c0_18 = arith.constant 0 : index
    %c3_19 = arith.constant 3 : index
    %19 = memref.load %arg2[%c0_18, %c3_19] : memref<1x4xf32, #tpu.memory_space<smem>>
    %20 = vector.broadcast %19 : f32 to vector<2x128xf32>
    %21 = arith.mulf %18, %20 : vector<2x128xf32>
    %22 = arith.addf %16, %21 : vector<2x128xf32>
    %c0_20 = arith.constant 0 : index
    %c0_21 = arith.constant 0 : index
    %c0_22 = arith.constant 0 : index
    %c0_23 = arith.constant 0 : index
    %23 = vector.load %arg4[%c0_20, %c0_21, %c0_22, %c0_23] : memref<1x1x2x128xf32, #tpu.memory_space<vmem>>, vector<1x1x2x128xf32>
    %24 = vector.shape_cast %23 : vector<1x1x2x128xf32> to vector<2x128xf32>
    %25 = vector.shape_cast %22 : vector<2x128xf32> to vector<1x1x2x128xf32>
    tpu.vector_store %arg4[%c0_20, %c0_21, %c0_22, %c0_23], %25 {strides = array<i32>} : memref<1x1x2x128xf32, #tpu.memory_space<vmem>>, vector<1x1x2x128xf32>,
    return
  }
  func.func @transform_0(%arg0: i32, %arg1: i32) -> (i32, i32) {
    %c0_i32 = arith.constant 0 : i32
    %c0_i32_0 = arith.constant 0 : i32
    %c0_i32_1 = arith.constant 0 : i32
    return %c0_i32, %c0_i32_0 : i32, i32
  }
  func.func @transform_1(%arg0: i32, %arg1: i32) -> (i32, i32, i32, i32) {
    %c0_i32 = arith.constant 0 : i32
    %c0_i32_0 = arith.constant 0 : i32
    %c0_i32_1 = arith.constant 0 : i32
    return %arg0, %c0_i32, %arg1, %c0_i32_0 : i32, i32, i32, i32
  }
  func.func @transform_2(%arg0: i32, %arg1: i32) -> (i32, i32, i32, i32) {
    %c0_i32 = arith.constant 0 : i32
    %c0_i32_0 = arith.constant 0 : i32
    %c0_i32_1 = arith.constant 0 : i32
    return %arg0, %c0_i32, %arg1, %c0_i32_0 : i32, i32, i32, i32
  }
}

</mosaic_0001>

<llo_original>
// kernel: conv1x1_forward.1
$region0: #{conv1x1_forward.1}
  #allocation0 [shape = 'u32[]', space=smem, size = 0x4, offset = 0x4, fixed_abs, tag = 'smem constant byte address 0x4 - core index']
  #allocation1 [shape = 'u32[144,128]{1,0:T(1,128)}', space=vmem, size = 0x12000, scoped, tag = 'internal scratch']
  %s0 = inlined_call_operand.vmem [shape: f32[1,4], index: 0, kind: input, shape index: {}]
  %s1 = inlined_call_operand.vmem [shape: f32[2,4,2,128], index: 1, kind: input, shape index: {}]
  %s2 = inlined_call_operand.vmem [shape: f32[2,1,2,128], index: 2, kind: output, shape index: {}]
  %s3 = sld [smem:[#allocation0]]
  $region45: #{conv1x1_forward.1} parent=0
    _
  %s5 = ssub.s32 1, %s3
  %s6 = scalar_select 0, %s5, %s3
  $region1: #{conv1x1_forward.1} parent=0
    #allocation2 [shape = 'u8[512]{0}', space=smem, size = 0x200, scoped, tag = 'input window, operand 0, single buffered']
    #allocation3 [shape = 's32[2]{0}', space=sflag, size = 0x8, scoped, tag = 'scoped memory for conv1x1_forward.1']
    %7 = vsyncpa [#allocation3], 0
    loop: start=0, step=1, limit=4
    $region2: #{conv1x1_forward.1} parent=1 // loop_pre_header
      _
    $region3: #{conv1x1_forward.1} parent=1 // loop_header
      %s9 = sphi 0, %s13
      %p10 = scmp.ge.s32.totalorder %s9, 4
      %s16 = sphi 0, %s28
      %s17 = sphi 0, %s24
      %s18 = sphi 0, %s16
      %s19 = sphi 0, %s17
      %s20 = sphi 0, %s18
      %s21 = sphi 0, %s19
      %s29 = sphi 0, %s29
      %s31 = sphi 0, %s29
      %s32 = sphi 0, %s31
      %s46 = sphi 0, %s32
      %s54 = sphi 0, %s56
      %s57 = sphi 0, %s54
      %s58 = sphi 0, %s57
      %s74 = sphi 0, %s58
      %s82 = sphi 0, %s84
      %s85 = sphi 0, %s82
      %s86 = sphi 0, %s85
      %s102 = sphi 0, %s86
    $region4: #{conv1x1_forward.1} parent=1 // loop_header_branch
      %12 = sbr.rel (%p10) target = $region8
    $region5: #{conv1x1_forward.1} parent=1 // loop_body
      %s14 = ssub.s32 %s9, 1
      %s15 = ssub.s32 %s9, 2
      %s22 = sadd.s32 1, %s17
      %p23 = scmp.ge.s32.totalorder %s22, 1
      %s24 = scalar_select %p23, 0, %s22
      %s25 = sadd.s32 1, %s16
      %s26 = scalar_select %p23, %s25, %s16
      %p27 = scmp.ge.s32.totalorder %s26, 2
      %s28 = scalar_select %p27, 0, %s26
      %s30 = sadd.s32 %s29, 1
      %p33 = scmp.eq.s32.totalorder %s9, 1
      %p34 = scmp.ne.s32.totalorder %s29, %s31
      %p35 = scmp.eq.s32.totalorder %s9, 0
      %p36 = por %p34, %p35
      %p37 = scmp.ne.s32.totalorder %s29, %s31
      %p38 = scmp.eq.s32.totalorder %s14, 1
      %p39 = por %p37, %p38
      %p40 = scmp.ne.s32.totalorder %s31, %s32
      %p41 = scmp.eq.s32.totalorder %s14, 0
      %p42 = por %p40, %p41
      %p43 = scmp.ne.s32.totalorder %s31, %s32
      %p44 = scmp.eq.s32.totalorder %s15, 1
      %p45 = por %p43, %p44
      %p47 = scmp.ne.s32.totalorder %s32, %s46
      %p48 = scmp.eq.s32.totalorder %s15, 0
      %p49 = por %p47, %p48
      %s50 = ssub.s32 %s16, %s28
      %s51 = ssub.s32 %s17, %s24
      %s52 = sor.u32 %s50, %s51
      %p53 = scmp.eq.s32.totalorder %s52, 0
      %s55 = sadd.s32 %s54, 1
      %s56 = scalar_select %p53, %s54, %s55
      %p59 = pneg %p53
      %p60 = scmp.eq.s32.totalorder %s9, 1
      %p61 = por %p59, %p60
      %p62 = scmp.ne.s32.totalorder %s54, %s57
      %p63 = scmp.eq.s32.totalorder %s9, 0
      %p64 = por %p62, %p63
      %p65 = scmp.ne.s32.totalorder %s54, %s57
      %p66 = scmp.eq.s32.totalorder %s14, 1
      %p67 = por %p65, %p66
      %p68 = scmp.ne.s32.totalorder %s57, %s58
      %p69 = scmp.eq.s32.totalorder %s14, 0
      %p70 = por %p68, %p69
      %p71 = scmp.ne.s32.totalorder %s57, %s58
      %p72 = scmp.eq.s32.totalorder %s15, 1
      %p73 = por %p71, %p72
      %p75 = scmp.ne.s32.totalorder %s58, %s74
      %p76 = scmp.eq.s32.totalorder %s15, 0
      %p77 = por %p75, %p76
      %s78 = ssub.s32 %s16, %s28
      %s79 = ssub.s32 %s17, %s24
      %s80 = sor.u32 %s78, %s79
      %p81 = scmp.eq.s32.totalorder %s80, 0
      %s83 = sadd.s32 %s82, 1
      %s84 = scalar_select %p81, %s82, %s83
      %p87 = pneg %p81
      %p88 = scmp.eq.s32.totalorder %s9, 1
      %p89 = por %p87, %p88
      %p90 = scmp.ne.s32.totalorder %s82, %s85
      %p91 = scmp.eq.s32.totalorder %s9, 0
      %p92 = por %p90, %p91
      %p93 = scmp.ne.s32.totalorder %s82, %s85
      %p94 = scmp.eq.s32.totalorder %s14, 1
      %p95 = por %p93, %p94
      %p96 = scmp.ne.s32.totalorder %s85, %s86
      %p97 = scmp.eq.s32.totalorder %s14, 0
      %p98 = por %p96, %p97
      %p99 = scmp.ne.s32.totalorder %s85, %s86
      %p100 = scmp.eq.s32.totalorder %s15, 1
      %p101 = por %p99, %p100
      %p103 = scmp.ne.s32.totalorder %s86, %s102
      %p104 = scmp.eq.s32.totalorder %s15, 0
      %p105 = por %p103, %p104
      %p106 = scmp.le.s32.totalorder 1, %s9
      %p107 = scmp.lt.s32.totalorder %s9, 3
      %p108 = pnand %p106, %p107
      %p109 = pneg %p108
      // Predicated region
      $region9: #{conv1x1_forward.1} parent=5 // pred_check
        _
      $region10: #{conv1x1_forward.1} parent=5 // pred_check_branch
        %111 = sbr.rel (%p108) target = $region12
      $region11: #{conv1x1_forward.1} parent=5 // pred_region
        %s112 = ssub.s32 %s9, 1
        // Predicated region
        $region13: #{conv1x1_forward.1} parent=11 // pred_check
          %p113 = pneg %p42
        $region14: #{conv1x1_forward.1} parent=11 // pred_check_branch
          %115 = sbr.rel (%p113) target = $region16
        $region15: #{conv1x1_forward.1} parent=11 // pred_region
          %s117 = ssub.s32 16, 16
          %118 = vsyncadd [#allocation3], %s117
          %s120 = sshll.u32 %s0, 4
          %s121 = int_to_ptr.vmem [resolvable:$true] %s120
          %123 = dma.vmem_to_smem %s121, 16, [#allocation2], [#allocation3]
        $region16: #{conv1x1_forward.1} parent=11 // pred_fallthru
          _
      $region12: #{conv1x1_forward.1} parent=5 // pred_fallthru
        _
      %p124 = scmp.lt.s32.totalorder %s9, 2
      // Predicated region
      $region17: #{conv1x1_forward.1} parent=5 // pred_check
        %p125 = pneg %p124
      $region18: #{conv1x1_forward.1} parent=5 // pred_check_branch
        %127 = sbr.rel (%p125) target = $region20
      $region19: #{conv1x1_forward.1} parent=5 // pred_region
        // Predicated region
        $region21: #{conv1x1_forward.1} parent=19 // pred_check
          %p128 = pneg %p64
        $region22: #{conv1x1_forward.1} parent=19 // pred_check_branch
          %130 = sbr.rel (%p128) target = $region24
        $region23: #{conv1x1_forward.1} parent=19 // pred_region
          %p131 = scmp.lt.s32.totalorder %s16, 1
          %s132 = scalar_select %p131, %s16, 1
          %p133 = scmp.lt.s32.totalorder %s17, 0
          %s134 = scalar_select %p133, %s17, 0
          %s135 = smul.addr %s132, 4
          %s136 = sadd.s32 %s134, %s135
          %s137 = smul.addr %s136, 2
          %s138 = scalar_lea.vmem %s1, %s137
        $region24: #{conv1x1_forward.1} parent=19 // pred_fallthru
          _
      $region20: #{conv1x1_forward.1} parent=5 // pred_fallthru
        _
      %p139 = scmp.le.s32.totalorder 1, %s9
      %p140 = scmp.lt.s32.totalorder %s9, 3
      %p141 = pnand %p139, %p140
      %p142 = pneg %p141
      // Predicated region
      $region25: #{conv1x1_forward.1} parent=5 // pred_check
        _
      $region26: #{conv1x1_forward.1} parent=5 // pred_check_branch
        %144 = sbr.rel (%p141) target = $region28
      $region27: #{conv1x1_forward.1} parent=5 // pred_region
        %s145 = ssub.s32 %s9, 1
        // Predicated region
        $region29: #{conv1x1_forward.1} parent=27 // pred_check
          %p146 = pneg %p42
        $region30: #{conv1x1_forward.1} parent=27 // pred_check_branch
          %148 = sbr.rel (%p146) target = $region32
        $region31: #{conv1x1_forward.1} parent=27 // pred_region
          %149 = dma.done [#allocation3], 16
        $region32: #{conv1x1_forward.1} parent=27 // pred_fallthru
          _
        %150 = sfence
        %p151 = pneg %p42
        %p152 = pneg %p39
        %p153 = scmp.lt.s32.totalorder %s18, 1
        %s154 = scalar_select %p153, %s18, 1
        %p155 = scmp.lt.s32.totalorder %s19, 0
        %s156 = scalar_select %p155, %s19, 0
        %s157 = smul.addr %s154, 4
        %s158 = sadd.s32 %s156, %s157
        %s159 = smul.addr %s158, 2
        %s160 = scalar_lea.vmem %s1, %s159
        %p161 = pneg %p70
        %p162 = pneg %p67
        %p163 = pneg %p98
        %p164 = pneg %p95
        %p165 = scmp.lt.s32.totalorder %s18, 1
        %s166 = scalar_select %p165, %s18, 1
        %p167 = scmp.lt.s32.totalorder %s19, 0
        %s168 = scalar_select %p167, %s19, 0
        %s169 = sadd.s32 %s168, %s166
        %s170 = smul.addr %s169, 2
        %s171 = scalar_lea.vmem %s2, %s170
        %p172 = scmp.lt.s32.totalorder %s18, 1
        %s173 = scalar_select %p172, %s18, 1
        %p174 = scmp.lt.s32.totalorder %s19, 0
        %s175 = scalar_select %p174, %s19, 0
        %s176 = smul.addr %s173, 4
        %s177 = sadd.s32 %s175, %s176
        %s178 = smul.addr %s177, 2
        %s179 = scalar_lea.vmem %s1, %s178
        %p180 = scmp.lt.s32.totalorder %s18, 1
        %s181 = scalar_select %p180, %s18, 1
        %p182 = scmp.lt.s32.totalorder %s19, 0
        %s183 = scalar_select %p182, %s19, 0
        %s184 = sadd.s32 %s183, %s181
        %s185 = smul.addr %s184, 2
        %s186 = scalar_lea.vmem %s2, %s185
        %v187 = vld [vmem:[%s179] sm:$0x3]
        %s188 = sld [smem:[#allocation2]]
        %v189 = vstv %s188
        %v190 = vmul.f32 %v187, %v189
        %s191 = scalar_lea.vmem %s179, 2
        %v192 = vld [vmem:[%s191] sm:$0x3]
        %s193 = sld [smem:[#allocation2 + $0x1]]
        %v194 = vstv %s193
        %v195 = vmul.f32 %v192, %v194
        %v196 = vadd.f32 %v190, %v195
        %s197 = scalar_lea.vmem %s179, 4
        %v198 = vld [vmem:[%s197] sm:$0x3]
        %s199 = sld [smem:[#allocation2 + $0x2]]
        %v200 = vstv %s199
        %v201 = vmul.f32 %v198, %v200
        %v202 = vadd.f32 %v196, %v201
        %s203 = scalar_lea.vmem %s179, 6
        %v204 = vld [vmem:[%s203] sm:$0x3]
        %s205 = sld [smem:[#allocation2 + $0x3]]
        %v206 = vstv %s205
        %v207 = vmul.f32 %v204, %v206
        %v208 = vadd.f32 %v202, %v207
        %209 = vst [vmem:[%s186] sm:$0x3] %v208
        %p210 = scmp.lt.s32.totalorder %s18, 1
        %s211 = scalar_select %p210, %s18, 1
        %p212 = scmp.lt.s32.totalorder %s19, 0
        %s213 = scalar_select %p212, %s19, 0
        %s214 = sadd.s32 %s213, %s211
        %s215 = smul.addr %s214, 2
        %s216 = scalar_lea.vmem %s2, %s215
        // Predicated region
        $region33: #{conv1x1_forward.1} parent=27 // pred_check
          %p217 = pneg %p95
        $region34: #{conv1x1_forward.1} parent=27 // pred_check_branch
          %219 = sbr.rel (%p217) target = $region36
        $region35: #{conv1x1_forward.1} parent=27 // pred_region
          _
        $region36: #{conv1x1_forward.1} parent=27 // pred_fallthru
          _
      $region28: #{conv1x1_forward.1} parent=5 // pred_fallthru
        _
      %p220 = scmp.le.s32.totalorder 2, %s9
      // Predicated region
      $region37: #{conv1x1_forward.1} parent=5 // pred_check
        %p221 = pneg %p220
      $region38: #{conv1x1_forward.1} parent=5 // pred_check_branch
        %223 = sbr.rel (%p221) target = $region40
      $region39: #{conv1x1_forward.1} parent=5 // pred_region
        %s224 = ssub.s32 %s9, 2
        // Predicated region
        $region41: #{conv1x1_forward.1} parent=39 // pred_check
          %p225 = pneg %p101
        $region42: #{conv1x1_forward.1} parent=39 // pred_check_branch
          %227 = sbr.rel (%p225) target = $region44
        $region43: #{conv1x1_forward.1} parent=39 // pred_region
          %p228 = scmp.lt.s32.totalorder %s20, 1
          %s229 = scalar_select %p228, %s20, 1
          %p230 = scmp.lt.s32.totalorder %s21, 0
          %s231 = scalar_select %p230, %s21, 0
          %s232 = sadd.s32 %s231, %s229
          %s233 = smul.addr %s232, 2
          %s234 = scalar_lea.vmem %s2, %s233
        $region44: #{conv1x1_forward.1} parent=39 // pred_fallthru
          _
      $region40: #{conv1x1_forward.1} parent=5 // pred_fallthru
        _
    $region6: #{conv1x1_forward.1} parent=1 // loop_footer
      %s13 = sadd.s32 1, %s9
    $region7: #{conv1x1_forward.1} parent=1 // loop_footer_branch
      %8 = sbr.rel target = $region3
    $region8: #{conv1x1_forward.1} parent=1 // loop_exit
      _
    %235 = vsyncpa [#allocation3], 1
    %s236 = scalar_lea.sflag [#allocation3], 1
    %237 = vsyncpa %s236, 1

</llo_original>
